<compile_context>
chip_gen: v5e
topology: v5e:2x2
jax: 0.10.0
libtpu: 0.0.40
codegen_flags: <defaults>
</compile_context>

<pallas_src>
import jax
import jax.numpy as jnp
from jax.experimental import pallas as pl
from jax.experimental.pallas import tpu as pltpu


# ---------------------------------------------------------------------------
# Fused Pallas kernel: MLP features for x and y + exact pairwise L2 distances
# ---------------------------------------------------------------------------
def adaptive_cost_kernel(x_ref, y_ref, w1_ref, b1_ref, w2_ref, b2_ref, o_ref):
    cdt = w1_ref.dtype  # MXU input dtype (bf16 recommended); accumulation is f32.

    def feats(a):
        h = jnp.dot(a.astype(cdt), w1_ref[...],
                    preferred_element_type=jnp.float32) + b1_ref[...]
        h = jnp.maximum(h, 0.0)                       # elementwise stays f32
        return jnp.dot(h.astype(cdt), w2_ref[...],
                       preferred_element_type=jnp.float32) + b2_ref[...]

    fx = feats(x_ref[...])   # (bx, F) f32, never leaves VMEM/vregs
    fy = feats(y_ref[...])   # (by, F) f32

    # Exact pairwise Euclidean distances: unrolled over the static, tiny `by`
    # rows.  Each step is a (1,F) sublane-broadcast subtract + lane reduce —
    # all well-supported 2-D ops, no transposes / relayouts, no Gram-trick
    # cancellation error.
    by = fy.shape[0]
    cols = []
    for j in range(by):                               # static unroll (by is tiny)
        dj = fx - fy[j:j + 1, :]                      # (bx, F)
        cols.append(jnp.sum(dj * dj, axis=-1, keepdims=True))  # (bx, 1)
    d2 = jnp.concatenate(cols, axis=-1)               # (bx, by)
    o_ref[...] = jnp.sqrt(d2)


# ---------------------------------------------------------------------------
# Wrapper
# ---------------------------------------------------------------------------
def first_element(t):
    # Mirrors the PyTorch helper; the tuple-returning feature_gen is folded
    # into the fused kernel, so this is only used conceptually.
    return t[0] if isinstance(t, (tuple, list)) else t


def adaptive_cost(x_nchw, y_nchw, params, p=2):
    """cdist(first_element(feature_gen(x)), first_element(feature_gen(y)), p=2)."""
    assert p == 2, "only p=2 (Euclidean) cdist implemented"
    # Weights arrive already in the desired MXU dtype (bf16 recommended on all
    # generations) — no per-call astype launch here.
    w1, b1, w2, b2 = params

    bx, by = x_nchw.shape[0], y_nchw.shape[0]
    x_flat = x_nchw.reshape(bx, -1)   # contiguous NCHW flatten: layout no-op
    y_flat = y_nchw.reshape(by, -1)
    din, hid = w1.shape
    feat = w2.shape[1]

    operands = (x_flat, y_flat, w1, b1, w2, b2)
    in_bytes = sum(int(a.size) * a.dtype.itemsize for a in operands)
    out_bytes = bx * by * 4
    cost = pl.CostEstimate(
        flops=2 * (bx + by) * (din * hid + hid * feat) + 3 * bx * by * feat,
        transcendentals=bx * by,                      # sqrt per output element
        bytes_accessed=in_bytes + out_bytes,
    )
    # Whole-array VMEM residency; give the compiler explicit headroom (stays
    # well under the 32 MiB default scoped / 64 MiB physical limit on v7x).
    vmem_limit = int(min(max(4 * (in_bytes + out_bytes), 8 << 20), 64 << 20))

    vmem = pl.BlockSpec(memory_space=pltpu.MemorySpace.VMEM)
    return pl.pallas_call(
        adaptive_cost_kernel,
        out_shape=jax.ShapeDtypeStruct((bx, by), jnp.float32),
        in_specs=[vmem] * 6,
        out_specs=vmem,
        compiler_params=pltpu.CompilerParams(vmem_limit_bytes=vmem_limit),
        cost_estimate=cost,
    )(*operands)


# ---------------------------------------------------------------------------
# Main
# ---------------------------------------------------------------------------
if __name__ == "__main__":
    key = jax.random.PRNGKey(0)
    kx, ky, k1, k2, k3, k4 = jax.random.split(key, 6)

    # Small NCHW inputs: batch=2, channels=4, spatial=16x16
    B, C, Hs, Ws = 2, 4, 16, 16
    Din = C * Hs * Ws        # 1024
    HID = 128                # hidden width of the synthetic feature generator
    FEAT = 64                # output feature dim

    x = jax.random.normal(kx, (B, C, Hs, Ws), dtype=jnp.float32)
    y = jax.random.normal(ky, (B, C, Hs, Ws), dtype=jnp.float32)

    # Deterministic parameter init (synthetic, no checkpoint loading).
    w1_f32 = jax.random.normal(k1, (Din, HID), dtype=jnp.float32) * 0.02
    b1 = jax.random.normal(k2, (1, HID), dtype=jnp.float32) * 0.01
    w2_f32 = jax.random.normal(k3, (HID, FEAT), dtype=jnp.float32) * 0.02
    b2 = jax.random.normal(k4, (1, FEAT), dtype=jnp.float32) * 0.01

    # Weights are stored/carried in bf16 ONCE (training-state dtype), so the
    # kernel reads bf16 directly from HBM — no per-call convert launch.
    mxu_dtype = jnp.bfloat16
    params = (w1_f32.astype(mxu_dtype), b1, w2_f32.astype(mxu_dtype), b2)

    dist = adaptive_cost(x, y, params, p=2)
    dist = jax.block_until_ready(dist)

    # Sanity check against a pure-JAX reference using the SAME bf16 weights and
    # bf16 matmul inputs with f32 accumulation (so only accumulation-order
    # noise differs; tolerance branches on the MXU dtype).
    def ref_feat(a):
        af = a.reshape(a.shape[0], -1)
        h = jnp.dot(af.astype(mxu_dtype), params[0],
                    preferred_element_type=jnp.float32) + b1
        h = jnp.maximum(h, 0.0)
        return jnp.dot(h.astype(mxu_dtype), params[2],
                       preferred_element_type=jnp.float32) + b2

    fx, fy = ref_feat(x), ref_feat(y)
    ref = jnp.sqrt(jnp.maximum(
        jnp.sum((fx[:, None, :] - fy[None, :, :]) ** 2, axis=-1), 0.0))
    tol = 1e-4 if mxu_dtype == jnp.float32 else 5e-3
    assert dist.shape == (B, B)
    assert jnp.allclose(dist, ref, atol=tol, rtol=tol)

    print("KERNEL_OK")
</pallas_src>

<mosaic_0001>
module attributes {stable_mosaic.version = 11 : i64} {
  func.func @adaptive_cost_kernel(%arg0: memref<2x1024xf32, #tpu.memory_space<vmem>>, %arg1: memref<2x1024xf32, #tpu.memory_space<vmem>>, %arg2: memref<1024x128xbf16, #tpu.memory_space<vmem>>, %arg3: memref<1x128xf32, #tpu.memory_space<vmem>>, %arg4: memref<128x64xbf16, #tpu.memory_space<vmem>>, %arg5: memref<1x64xf32, #tpu.memory_space<vmem>>, %arg6: memref<2x2xf32, #tpu.memory_space<vmem>>) attributes {dimension_semantics = [], scalar_prefetch = 0 : i64, scratch_operands = 0 : i64, tpu.core_type = #tpu.core_type<tc>} {
    %c0 = arith.constant 0 : index
    %c0_0 = arith.constant 0 : index
    %0 = vector.load %arg0[%c0, %c0_0] : memref<2x1024xf32, #tpu.memory_space<vmem>>, vector<2x1024xf32>
    %1 = arith.truncf %0 : vector<2x1024xf32> to vector<2x1024xbf16>
    %c0_1 = arith.constant 0 : index
    %c0_2 = arith.constant 0 : index
    %2 = vector.load %arg2[%c0_1, %c0_2] : memref<1024x128xbf16, #tpu.memory_space<vmem>>, vector<1024x128xbf16>
    %cst = arith.constant dense<0.000000e+00> : vector<2x128xf32>
    %3 = tpu.matmul %1, %2, %cst {dimension_numbers = #tpu.dot_dimension_numbers<[1], [0], [0], [1], [0, 0, 1, 1], [], []>} : vector<2x1024xbf16>, vector<1024x128xbf16>, vector<2x128xf32> -> vector<2x128xf32>
    %c0_3 = arith.constant 0 : index
    %c0_4 = arith.constant 0 : index
    %4 = vector.load %arg3[%c0_3, %c0_4] : memref<1x128xf32, #tpu.memory_space<vmem>>, vector<1x128xf32>
    %5 = vector.broadcast %4 : vector<1x128xf32> to vector<2x128xf32>
    %6 = arith.addf %3, %5 : vector<2x128xf32>
    %cst_5 = arith.constant 0.000000e+00 : f32
    %7 = vector.broadcast %cst_5 : f32 to vector<2x128xf32>
    %8 = arith.maximumf %6, %7 : vector<2x128xf32>
    %9 = arith.truncf %8 : vector<2x128xf32> to vector<2x128xbf16>
    %c0_6 = arith.constant 0 : index
    %c0_7 = arith.constant 0 : index
    %10 = vector.load %arg4[%c0_6, %c0_7] : memref<128x64xbf16, #tpu.memory_space<vmem>>, vector<128x64xbf16>
    %cst_8 = arith.constant dense<0.000000e+00> : vector<2x64xf32>
    %11 = tpu.matmul %9, %10, %cst_8 {dimension_numbers = #tpu.dot_dimension_numbers<[1], [0], [0], [1], [0, 0, 1, 1], [], []>} : vector<2x128xbf16>, vector<128x64xbf16>, vector<2x64xf32> -> vector<2x64xf32>
    %c0_9 = arith.constant 0 : index
    %c0_10 = arith.constant 0 : index
    %12 = vector.load %arg5[%c0_9, %c0_10] : memref<1x64xf32, #tpu.memory_space<vmem>>, vector<1x64xf32>
    %13 = vector.broadcast %12 : vector<1x64xf32> to vector<2x64xf32>
    %14 = arith.addf %11, %13 : vector<2x64xf32>
    %c0_11 = arith.constant 0 : index
    %c0_12 = arith.constant 0 : index
    %15 = vector.load %arg1[%c0_11, %c0_12] : memref<2x1024xf32, #tpu.memory_space<vmem>>, vector<2x1024xf32>
    %16 = arith.truncf %15 : vector<2x1024xf32> to vector<2x1024xbf16>
    %c0_13 = arith.constant 0 : index
    %c0_14 = arith.constant 0 : index
    %17 = vector.load %arg2[%c0_13, %c0_14] : memref<1024x128xbf16, #tpu.memory_space<vmem>>, vector<1024x128xbf16>
    %cst_15 = arith.constant dense<0.000000e+00> : vector<2x128xf32>
    %18 = tpu.matmul %16, %17, %cst_15 {dimension_numbers = #tpu.dot_dimension_numbers<[1], [0], [0], [1], [0, 0, 1, 1], [], []>} : vector<2x1024xbf16>, vector<1024x128xbf16>, vector<2x128xf32> -> vector<2x128xf32>
    %c0_16 = arith.constant 0 : index
    %c0_17 = arith.constant 0 : index
    %19 = vector.load %arg3[%c0_16, %c0_17] : memref<1x128xf32, #tpu.memory_space<vmem>>, vector<1x128xf32>
    %20 = vector.broadcast %19 : vector<1x128xf32> to vector<2x128xf32>
    %21 = arith.addf %18, %20 : vector<2x128xf32>
    %cst_18 = arith.constant 0.000000e+00 : f32
    %22 = vector.broadcast %cst_18 : f32 to vector<2x128xf32>
    %23 = arith.maximumf %21, %22 : vector<2x128xf32>
    %24 = arith.truncf %23 : vector<2x128xf32> to vector<2x128xbf16>
    %c0_19 = arith.constant 0 : index
    %c0_20 = arith.constant 0 : index
    %25 = vector.load %arg4[%c0_19, %c0_20] : memref<128x64xbf16, #tpu.memory_space<vmem>>, vector<128x64xbf16>
    %cst_21 = arith.constant dense<0.000000e+00> : vector<2x64xf32>
    %26 = tpu.matmul %24, %25, %cst_21 {dimension_numbers = #tpu.dot_dimension_numbers<[1], [0], [0], [1], [0, 0, 1, 1], [], []>} : vector<2x128xbf16>, vector<128x64xbf16>, vector<2x64xf32> -> vector<2x64xf32>
    %c0_22 = arith.constant 0 : index
    %c0_23 = arith.constant 0 : index
    %27 = vector.load %arg5[%c0_22, %c0_23] : memref<1x64xf32, #tpu.memory_space<vmem>>, vector<1x64xf32>
    %28 = vector.broadcast %27 : vector<1x64xf32> to vector<2x64xf32>
    %29 = arith.addf %26, %28 : vector<2x64xf32>
    %30 = vector.extract_strided_slice %29 {offsets = [0, 0], sizes = [1, 64], strides = [1, 1]} : vector<2x64xf32> to vector<1x64xf32>
    %31 = vector.broadcast %30 : vector<1x64xf32> to vector<2x64xf32>
    %32 = arith.subf %14, %31 : vector<2x64xf32>
    %33 = arith.mulf %32, %32 : vector<2x64xf32>
    %cst_24 = arith.constant dense<0.000000e+00> : vector<2xf32>
    %34 = vector.multi_reduction <add>, %33, %cst_24 [1] : vector<2x64xf32> to vector<2xf32>
    %35 = vector.shape_cast %34 : vector<2xf32> to vector<2x1xf32>
    %36 = vector.extract_strided_slice %29 {offsets = [1, 0], sizes = [1, 64], strides = [1, 1]} : vector<2x64xf32> to vector<1x64xf32>
    %37 = vector.broadcast %36 : vector<1x64xf32> to vector<2x64xf32>
    %38 = arith.subf %14, %37 : vector<2x64xf32>
    %39 = arith.mulf %38, %38 : vector<2x64xf32>
    %cst_25 = arith.constant dense<0.000000e+00> : vector<2xf32>
    %40 = vector.multi_reduction <add>, %39, %cst_25 [1] : vector<2x64xf32> to vector<2xf32>
    %41 = vector.shape_cast %40 : vector<2xf32> to vector<2x1xf32>
    %42 = tpu.concatenate %35, %41 in 1 : vector<2x1xf32>, vector<2x1xf32> -> vector<2x2xf32>
    %43 = math.sqrt %42 : vector<2x2xf32>
    %c0_26 = arith.constant 0 : index
    %c0_27 = arith.constant 0 : index
    %44 = vector.load %arg6[%c0_26, %c0_27] : memref<2x2xf32, #tpu.memory_space<vmem>>, vector<2x2xf32>
    tpu.vector_store %arg6[%c0_26, %c0_27], %43 {strides = array<i32>} : memref<2x2xf32, #tpu.memory_space<vmem>>, vector<2x2xf32>,
    return
  }
}

</mosaic_0001>

<llo_original>
// kernel: tpu_custom_call.1
$region0: #{tpu_custom_call.1}
  #allocation0 [shape = 'u32[]', space=smem, size = 0x4, offset = 0x4, fixed_abs, tag = 'smem constant byte address 0x4 - core index']
  #allocation1 [shape = 'u32[72,128]{1,0:T(1,128)}', space=vmem, size = 0x9000, scoped, tag = 'internal scratch']
  %s0 = inlined_call_operand.vmem [shape: f32[2,1024], index: 0, kind: input, shape index: {}]
  %s1 = inlined_call_operand.vmem [shape: f32[2,1024], index: 1, kind: input, shape index: {}]
  %s2 = inlined_call_operand.hbm [shape: bf16[1024,128], index: 2, kind: input, shape index: {}]
  %s3 = inlined_call_operand.vmem [shape: f32[1,128], index: 3, kind: input, shape index: {}]
  %s4 = inlined_call_operand.vmem [shape: bf16[128,64], index: 4, kind: input, shape index: {}]
  %s5 = inlined_call_operand.vmem [shape: f32[1,64], index: 5, kind: input, shape index: {}]
  %s6 = inlined_call_operand.hbm [shape: f32[2,2], index: 6, kind: output, shape index: {}]
  %s7 = sld [smem:[#allocation0]]
  $region38: #{tpu_custom_call.1} parent=0
    _
  %s9 = ssub.s32 1, %s7
  %s10 = scalar_select 0, %s9, %s7
  $region1: #{tpu_custom_call.1} parent=0
    #allocation2 [shape = 'u8[262144]{0}', space=vmem, size = 0x40000, scoped, tag = 'input window, operand 2, single buffered']
    #allocation3 [shape = 's32[1]{0}', space=sflag, size = 0x4, scoped, tag = 'scoped memory for tpu_custom_call.1']
    #allocation4 [shape = 's32[1]{0}', space=sflag, size = 0x4, scoped, tag = 'scoped memory for tpu_custom_call.1']
    #allocation5 [shape = 'u8[1024]{0}', space=vmem, size = 0x400, scoped, tag = 'output window, operand 0, single buffered']
    %11 = vsyncpa [#allocation3], 0
    %12 = vsyncpa [#allocation4], 0
    // Predicated region
    $region2: #{tpu_custom_call.1} parent=1 // pred_check
      _
    $region3: #{tpu_custom_call.1} parent=1 // pred_check_branch
      %14 = sbr.rel (0) target = $region5
    $region4: #{tpu_custom_call.1} parent=1 // pred_region
      _
    $region5: #{tpu_custom_call.1} parent=1 // pred_fallthru
      _
    // Predicated region
    $region6: #{tpu_custom_call.1} parent=1 // pred_check
      _
    $region7: #{tpu_custom_call.1} parent=1 // pred_check_branch
      %16 = sbr.rel (0) target = $region9
    $region8: #{tpu_custom_call.1} parent=1 // pred_region
      _
    $region9: #{tpu_custom_call.1} parent=1 // pred_fallthru
      _
    // Predicated region
    $region10: #{tpu_custom_call.1} parent=1 // pred_check
      _
    $region11: #{tpu_custom_call.1} parent=1 // pred_check_branch
      %18 = sbr.rel (0) target = $region13
    $region12: #{tpu_custom_call.1} parent=1 // pred_region
      %20 = vsyncadd [#allocation3], 0
      %s21 = sshll.u32 %s2, 4
      %s22 = int_to_ptr.hbm [resolvable:$true] %s21
      %s23 = sshll.u32 [#allocation2], 4
      %s24 = int_to_ptr.vmem [resolvable:$true] %s23
      %29 = dma.hbm_to_vmem [thread:$0]  %s22, 8192, %s24, [#allocation3], 64, 64, 4
    $region13: #{tpu_custom_call.1} parent=1 // pred_fallthru
      _
    // Predicated region
    $region14: #{tpu_custom_call.1} parent=1 // pred_check
      _
    $region15: #{tpu_custom_call.1} parent=1 // pred_check_branch
      %31 = sbr.rel (0) target = $region17
    $region16: #{tpu_custom_call.1} parent=1 // pred_region
      _
    $region17: #{tpu_custom_call.1} parent=1 // pred_fallthru
      _
    // Predicated region
    $region18: #{tpu_custom_call.1} parent=1 // pred_check
      _
    $region19: #{tpu_custom_call.1} parent=1 // pred_check_branch
      %33 = sbr.rel (0) target = $region21
    $region20: #{tpu_custom_call.1} parent=1 // pred_region
      _
    $region21: #{tpu_custom_call.1} parent=1 // pred_fallthru
      _
    // Predicated region
    $region22: #{tpu_custom_call.1} parent=1 // pred_check
      _
    $region23: #{tpu_custom_call.1} parent=1 // pred_check_branch
      %35 = sbr.rel (0) target = $region25
    $region24: #{tpu_custom_call.1} parent=1 // pred_region
      _
    $region25: #{tpu_custom_call.1} parent=1 // pred_fallthru
      _
    // Predicated region
    $region26: #{tpu_custom_call.1} parent=1 // pred_check
      _
    $region27: #{tpu_custom_call.1} parent=1 // pred_check_branch
      %37 = sbr.rel (0) target = $region29
    $region28: #{tpu_custom_call.1} parent=1 // pred_region
      %39 = dma.done [#allocation3], 8192
    $region29: #{tpu_custom_call.1} parent=1 // pred_fallthru
      _
    %v40 = vld [vmem:[%s0] sm:$0xff]
    %v41 = vld [vmem:[%s0 + $0x8] sm:$0xff]
    %44 = vst [vmem:[#allocation1] ss:$4 sm:$0xff] %v40
    %s45 = scalar_lea.vmem [#allocation1], 32
    %46 = vst [vmem:[%s45] ss:$4 sm:$0xff] %v41
    %v47 = vld.sshfl [vmem:[#allocation1] sm:$0xff pattern:$0x73625140]
    %v48 = vld.sshfl [vmem:[#allocation1 + $0x8] sm:$0xff pattern:$0x73625140]
    %v49 = vld.sshfl [vmem:[#allocation1 + $0x10] sm:$0xff pattern:$0x73625140]
    %v50 = vld.sshfl [vmem:[#allocation1 + $0x18] sm:$0xff pattern:$0x73625140]
    %v51 = vld.sshfl [vmem:[#allocation1 + $0x20] sm:$0xff pattern:$0x73625140]
    %v52 = vld.sshfl [vmem:[#allocation1 + $0x28] sm:$0xff pattern:$0x73625140]
    %v53 = vld.sshfl [vmem:[#allocation1 + $0x30] sm:$0xff pattern:$0x73625140]
    %v54 = vld.sshfl [vmem:[#allocation1 + $0x38] sm:$0xff pattern:$0x73625140]
    %v63 = vpack.c.bf16 %v47, %v47
    %v64 = vpack.c.bf16 %v48, %v48
    %v65 = vpack.c.bf16 %v49, %v49
    %v66 = vpack.c.bf16 %v50, %v50
    %v67 = vpack.c.bf16 %v51, %v51
    %v68 = vpack.c.bf16 %v52, %v52
    %v69 = vpack.c.bf16 %v53, %v53
    %v70 = vpack.c.bf16 %v54, %v54
    %v71 = vld [vmem:[#allocation2] sm:$0xf]
    %v72 = vld [vmem:[#allocation2 + $0x4] sm:$0xf]
    %v73 = vld [vmem:[#allocation2 + $0x8] sm:$0xf]
    %v74 = vld [vmem:[#allocation2 + $0xc] sm:$0xf]
    %v75 = vld [vmem:[#allocation2 + $0x10] sm:$0xf]
    %v76 = vld [vmem:[#allocation2 + $0x14] sm:$0xf]
    %v77 = vld [vmem:[#allocation2 + $0x18] sm:$0xf]
    %v78 = vld [vmem:[#allocation2 + $0x1c] sm:$0xf]
    %v79 = vld [vmem:[#allocation2 + $0x20] sm:$0xf]
    %v80 = vld [vmem:[#allocation2 + $0x24] sm:$0xf]
    %v81 = vld [vmem:[#allocation2 + $0x28] sm:$0xf]
    %v82 = vld [vmem:[#allocation2 + $0x2c] sm:$0xf]
    %v83 = vld [vmem:[#allocation2 + $0x30] sm:$0xf]
    %v84 = vld [vmem:[#allocation2 + $0x34] sm:$0xf]
    %v85 = vld [vmem:[#allocation2 + $0x38] sm:$0xf]
    %v86 = vld [vmem:[#allocation2 + $0x3c] sm:$0xf]
    %v87 = vld [vmem:[#allocation2 + $0x40] sm:$0xf]
    %v88 = vld [vmem:[#allocation2 + $0x44] sm:$0xf]
    %v89 = vld [vmem:[#allocation2 + $0x48] sm:$0xf]
    %v90 = vld [vmem:[#allocation2 + $0x4c] sm:$0xf]
    %v91 = vld [vmem:[#allocation2 + $0x50] sm:$0xf]
    %v92 = vld [vmem:[#allocation2 + $0x54] sm:$0xf]
    %v93 = vld [vmem:[#allocation2 + $0x58] sm:$0xf]
    %v94 = vld [vmem:[#allocation2 + $0x5c] sm:$0xf]
    %v95 = vld [vmem:[#allocation2 + $0x60] sm:$0xf]
    %v96 = vld [vmem:[#allocation2 + $0x64] sm:$0xf]
    %v97 = vld [vmem:[#allocation2 + $0x68] sm:$0xf]
    %v98 = vld [vmem:[#allocation2 + $0x6c] sm:$0xf]
    %v99 = vld [vmem:[#allocation2 + $0x70] sm:$0xf]
    %v100 = vld [vmem:[#allocation2 + $0x74] sm:$0xf]
    %v101 = vld [vmem:[#allocation2 + $0x78] sm:$0xf]
    %v102 = vld [vmem:[#allocation2 + $0x7c] sm:$0xf]
    %v103 = vld [vmem:[#allocation2 + $0x80] sm:$0xf]
    %v104 = vld [vmem:[#allocation2 + $0x84] sm:$0xf]
    %v105 = vld [vmem:[#allocation2 + $0x88] sm:$0xf]
    %v106 = vld [vmem:[#allocation2 + $0x8c] sm:$0xf]
    %v107 = vld [vmem:[#allocation2 + $0x90] sm:$0xf]
    %v108 = vld [vmem:[#allocation2 + $0x94] sm:$0xf]
    %v109 = vld [vmem:[#allocation2 + $0x98] sm:$0xf]
    %v110 = vld [vmem:[#allocation2 + $0x9c] sm:$0xf]
    %v111 = vld [vmem:[#allocation2 + $0xa0] sm:$0xf]
    %v112 = vld [vmem:[#allocation2 + $0xa4] sm:$0xf]
    %v113 = vld [vmem:[#allocation2 + $0xa8] sm:$0xf]
    %v114 = vld [vmem:[#allocation2 + $0xac] sm:$0xf]
    %v115 = vld [vmem:[#allocation2 + $0xb0] sm:$0xf]
    %v116 = vld [vmem:[#allocation2 + $0xb4] sm:$0xf]
    %v117 = vld [vmem:[#allocation2 + $0xb8] sm:$0xf]
    %v118 = vld [vmem:[#allocation2 + $0xbc] sm:$0xf]
    %v119 = vld [vmem:[#allocation2 + $0xc0] sm:$0xf]
    %v120 = vld [vmem:[#allocation2 + $0xc4] sm:$0xf]
    %v121 = vld [vmem:[#allocation2 + $0xc8] sm:$0xf]
    %v122 = vld [vmem:[#allocation2 + $0xcc] sm:$0xf]
    %v123 = vld [vmem:[#allocation2 + $0xd0] sm:$0xf]
    %v124 = vld [vmem:[#allocation2 + $0xd4] sm:$0xf]
    %v125 = vld [vmem:[#allocation2 + $0xd8] sm:$0xf]
    %v126 = vld [vmem:[#allocation2 + $0xdc] sm:$0xf]
    %v127 = vld [vmem:[#allocation2 + $0xe0] sm:$0xf]
    %v128 = vld [vmem:[#allocation2 + $0xe4] sm:$0xf]
    %v129 = vld [vmem:[#allocation2 + $0xe8] sm:$0xf]
    %v130 = vld [vmem:[#allocation2 + $0xec] sm:$0xf]
    %v131 = vld [vmem:[#allocation2 + $0xf0] sm:$0xf]
    %v132 = vld [vmem:[#allocation2 + $0xf4] sm:$0xf]
    %v133 = vld [vmem:[#allocation2 + $0xf8] sm:$0xf]
    %v134 = vld [vmem:[#allocation2 + $0xfc] sm:$0xf]
    %v135 = vld [vmem:[#allocation2 + $0x100] sm:$0xf]
    %v136 = vld [vmem:[#allocation2 + $0x104] sm:$0xf]
    %v137 = vld [vmem:[#allocation2 + $0x108] sm:$0xf]
    %v138 = vld [vmem:[#allocation2 + $0x10c] sm:$0xf]
    %v139 = vld [vmem:[#allocation2 + $0x110] sm:$0xf]
    %v140 = vld [vmem:[#allocation2 + $0x114] sm:$0xf]
    %v141 = vld [vmem:[#allocation2 + $0x118] sm:$0xf]
    %v142 = vld [vmem:[#allocation2 + $0x11c] sm:$0xf]
    %v143 = vld [vmem:[#allocation2 + $0x120] sm:$0xf]
    %v144 = vld [vmem:[#allocation2 + $0x124] sm:$0xf]
    %v145 = vld [vmem:[#allocation2 + $0x128] sm:$0xf]
    %v146 = vld [vmem:[#allocation2 + $0x12c] sm:$0xf]
    %v147 = vld [vmem:[#allocation2 + $0x130] sm:$0xf]
    %v148 = vld [vmem:[#allocation2 + $0x134] sm:$0xf]
    %v149 = vld [vmem:[#allocation2 + $0x138] sm:$0xf]
    %v150 = vld [vmem:[#allocation2 + $0x13c] sm:$0xf]
    %v151 = vld [vmem:[#allocation2 + $0x140] sm:$0xf]
    %v152 = vld [vmem:[#allocation2 + $0x144] sm:$0xf]
    %v153 = vld [vmem:[#allocation2 + $0x148] sm:$0xf]
    %v154 = vld [vmem:[#allocation2 + $0x14c] sm:$0xf]
    %v155 = vld [vmem:[#allocation2 + $0x150] sm:$0xf]
    %v156 = vld [vmem:[#allocation2 + $0x154] sm:$0xf]
    %v157 = vld [vmem:[#allocation2 + $0x158] sm:$0xf]
    %v158 = vld [vmem:[#allocation2 + $0x15c] sm:$0xf]
    %v159 = vld [vmem:[#allocation2 + $0x160] sm:$0xf]
    %v160 = vld [vmem:[#allocation2 + $0x164] sm:$0xf]
    %v161 = vld [vmem:[#allocation2 + $0x168] sm:$0xf]
    %v162 = vld [vmem:[#allocation2 + $0x16c] sm:$0xf]
    %v163 = vld [vmem:[#allocation2 + $0x170] sm:$0xf]
    %v164 = vld [vmem:[#allocation2 + $0x174] sm:$0xf]
    %v165 = vld [vmem:[#allocation2 + $0x178] sm:$0xf]
    %v166 = vld [vmem:[#allocation2 + $0x17c] sm:$0xf]
    %v167 = vld [vmem:[#allocation2 + $0x180] sm:$0xf]
    %v168 = vld [vmem:[#allocation2 + $0x184] sm:$0xf]
    %v169 = vld [vmem:[#allocation2 + $0x188] sm:$0xf]
    %v170 = vld [vmem:[#allocation2 + $0x18c] sm:$0xf]
    %v171 = vld [vmem:[#allocation2 + $0x190] sm:$0xf]
    %v172 = vld [vmem:[#allocation2 + $0x194] sm:$0xf]
    %v173 = vld [vmem:[#allocation2 + $0x198] sm:$0xf]
    %v174 = vld [vmem:[#allocation2 + $0x19c] sm:$0xf]
    %v175 = vld [vmem:[#allocation2 + $0x1a0] sm:$0xf]
    %v176 = vld [vmem:[#allocation2 + $0x1a4] sm:$0xf]
    %v177 = vld [vmem:[#allocation2 + $0x1a8] sm:$0xf]
    %v178 = vld [vmem:[#allocation2 + $0x1ac] sm:$0xf]
    %v179 = vld [vmem:[#allocation2 + $0x1b0] sm:$0xf]
    %v180 = vld [vmem:[#allocation2 + $0x1b4] sm:$0xf]
    %v181 = vld [vmem:[#allocation2 + $0x1b8] sm:$0xf]
    %v182 = vld [vmem:[#allocation2 + $0x1bc] sm:$0xf]
    %v183 = vld [vmem:[#allocation2 + $0x1c0] sm:$0xf]
    %v184 = vld [vmem:[#allocation2 + $0x1c4] sm:$0xf]
    %v185 = vld [vmem:[#allocation2 + $0x1c8] sm:$0xf]
    %v186 = vld [vmem:[#allocation2 + $0x1cc] sm:$0xf]
    %v187 = vld [vmem:[#allocation2 + $0x1d0] sm:$0xf]
    %v188 = vld [vmem:[#allocation2 + $0x1d4] sm:$0xf]
    %v189 = vld [vmem:[#allocation2 + $0x1d8] sm:$0xf]
    %v190 = vld [vmem:[#allocation2 + $0x1dc] sm:$0xf]
    %v191 = vld [vmem:[#allocation2 + $0x1e0] sm:$0xf]
    %v192 = vld [vmem:[#allocation2 + $0x1e4] sm:$0xf]
    %v193 = vld [vmem:[#allocation2 + $0x1e8] sm:$0xf]
    %v194 = vld [vmem:[#allocation2 + $0x1ec] sm:$0xf]
    %v195 = vld [vmem:[#allocation2 + $0x1f0] sm:$0xf]
    %v196 = vld [vmem:[#allocation2 + $0x1f4] sm:$0xf]
    %v197 = vld [vmem:[#allocation2 + $0x1f8] sm:$0xf]
    %v198 = vld [vmem:[#allocation2 + $0x1fc] sm:$0xf]
    %v199 = vld [vmem:[%s3] sm:$0x1]
    %v201 = vperm.slane %v199, 0
    %v331 = vunpack.c.l.b16 %v71
    %v332 = vunpack.c.l.b16 %v72
    %v333 = vunpack.c.l.b16 %v73
    %v334 = vunpack.c.l.b16 %v74
    %v335 = vunpack.c.l.b16 %v75
    %v336 = vunpack.c.l.b16 %v76
    %v337 = vunpack.c.l.b16 %v77
    %v338 = vunpack.c.l.b16 %v78
    %v339 = vunpack.c.l.b16 %v79
    %v340 = vunpack.c.l.b16 %v80
    %v341 = vunpack.c.l.b16 %v81
    %v342 = vunpack.c.l.b16 %v82
    %v343 = vunpack.c.l.b16 %v83
    %v344 = vunpack.c.l.b16 %v84
    %v345 = vunpack.c.l.b16 %v85
    %v346 = vunpack.c.l.b16 %v86
    %v347 = vunpack.c.l.b16 %v87
    %v348 = vunpack.c.l.b16 %v88
    %v349 = vunpack.c.l.b16 %v89
    %v350 = vunpack.c.l.b16 %v90
    %v351 = vunpack.c.l.b16 %v91
    %v352 = vunpack.c.l.b16 %v92
    %v353 = vunpack.c.l.b16 %v93
    %v354 = vunpack.c.l.b16 %v94
    %v355 = vunpack.c.l.b16 %v95
    %v356 = vunpack.c.l.b16 %v96
    %v357 = vunpack.c.l.b16 %v97
    %v358 = vunpack.c.l.b16 %v98
    %v359 = vunpack.c.l.b16 %v99
    %v360 = vunpack.c.l.b16 %v100
    %v361 = vunpack.c.l.b16 %v101
    %v362 = vunpack.c.l.b16 %v102
    %v363 = vunpack.c.l.b16 %v103
    %v364 = vunpack.c.l.b16 %v104
    %v365 = vunpack.c.l.b16 %v105
    %v366 = vunpack.c.l.b16 %v106
    %v367 = vunpack.c.l.b16 %v107
    %v368 = vunpack.c.l.b16 %v108
    %v369 = vunpack.c.l.b16 %v109
    %v370 = vunpack.c.l.b16 %v110
    %v371 = vunpack.c.l.b16 %v111
    %v372 = vunpack.c.l.b16 %v112
    %v373 = vunpack.c.l.b16 %v113
    %v374 = vunpack.c.l.b16 %v114
    %v375 = vunpack.c.l.b16 %v115
    %v376 = vunpack.c.l.b16 %v116
    %v377 = vunpack.c.l.b16 %v117
    %v378 = vunpack.c.l.b16 %v118
    %v379 = vunpack.c.l.b16 %v119
    %v380 = vunpack.c.l.b16 %v120
    %v381 = vunpack.c.l.b16 %v121
    %v382 = vunpack.c.l.b16 %v122
    %v383 = vunpack.c.l.b16 %v123
    %v384 = vunpack.c.l.b16 %v124
    %v385 = vunpack.c.l.b16 %v125
    %v386 = vunpack.c.l.b16 %v126
    %v387 = vunpack.c.l.b16 %v127
    %v388 = vunpack.c.l.b16 %v128
    %v389 = vunpack.c.l.b16 %v129
    %v390 = vunpack.c.l.b16 %v130
    %v391 = vunpack.c.l.b16 %v131
    %v392 = vunpack.c.l.b16 %v132
    %v393 = vunpack.c.l.b16 %v133
    %v394 = vunpack.c.l.b16 %v134
    %v395 = vunpack.c.l.b16 %v135
    %v396 = vunpack.c.l.b16 %v136
    %v397 = vunpack.c.l.b16 %v137
    %v398 = vunpack.c.l.b16 %v138
    %v399 = vunpack.c.l.b16 %v139
    %v400 = vunpack.c.l.b16 %v140
    %v401 = vunpack.c.l.b16 %v141
    %v402 = vunpack.c.l.b16 %v142
    %v403 = vunpack.c.l.b16 %v143
    %v404 = vunpack.c.l.b16 %v144
    %v405 = vunpack.c.l.b16 %v145
    %v406 = vunpack.c.l.b16 %v146
    %v407 = vunpack.c.l.b16 %v147
    %v408 = vunpack.c.l.b16 %v148
    %v409 = vunpack.c.l.b16 %v149
    %v410 = vunpack.c.l.b16 %v150
    %v411 = vunpack.c.l.b16 %v151
    %v412 = vunpack.c.l.b16 %v152
    %v413 = vunpack.c.l.b16 %v153
    %v414 = vunpack.c.l.b16 %v154
    %v415 = vunpack.c.l.b16 %v155
    %v416 = vunpack.c.l.b16 %v156
    %v417 = vunpack.c.l.b16 %v157
    %v418 = vunpack.c.l.b16 %v158
    %v419 = vunpack.c.l.b16 %v159
    %v420 = vunpack.c.l.b16 %v160
    %v421 = vunpack.c.l.b16 %v161
    %v422 = vunpack.c.l.b16 %v162
    %v423 = vunpack.c.l.b16 %v163
    %v424 = vunpack.c.l.b16 %v164
    %v425 = vunpack.c.l.b16 %v165
    %v426 = vunpack.c.l.b16 %v166
    %v427 = vunpack.c.l.b16 %v167
    %v428 = vunpack.c.l.b16 %v168
    %v429 = vunpack.c.l.b16 %v169
    %v430 = vunpack.c.l.b16 %v170
    %v431 = vunpack.c.l.b16 %v171
    %v432 = vunpack.c.l.b16 %v172
    %v433 = vunpack.c.l.b16 %v173
    %v434 = vunpack.c.l.b16 %v174
    %v435 = vunpack.c.l.b16 %v175
    %v436 = vunpack.c.l.b16 %v176
    %v437 = vunpack.c.l.b16 %v177
    %v438 = vunpack.c.l.b16 %v178
    %v439 = vunpack.c.l.b16 %v179
    %v440 = vunpack.c.l.b16 %v180
    %v441 = vunpack.c.l.b16 %v181
    %v442 = vunpack.c.l.b16 %v182
    %v443 = vunpack.c.l.b16 %v183
    %v444 = vunpack.c.l.b16 %v184
    %v445 = vunpack.c.l.b16 %v185
    %v446 = vunpack.c.l.b16 %v186
    %v447 = vunpack.c.l.b16 %v187
    %v448 = vunpack.c.l.b16 %v188
    %v449 = vunpack.c.l.b16 %v189
    %v450 = vunpack.c.l.b16 %v190
    %v451 = vunpack.c.l.b16 %v191
    %v452 = vunpack.c.l.b16 %v192
    %v453 = vunpack.c.l.b16 %v193
    %v454 = vunpack.c.l.b16 %v194
    %v455 = vunpack.c.l.b16 %v195
    %v456 = vunpack.c.l.b16 %v196
    %v457 = vunpack.c.l.b16 %v197
    %v458 = vunpack.c.l.b16 %v198
    %v459 = vpack.c.b16 %v332, %v331
    %v460 = vpack.c.b16 %v334, %v333
    %v461 = vpack.c.b16 %v336, %v335
    %v462 = vpack.c.b16 %v338, %v337
    %v463 = vpack.c.b16 %v340, %v339
    %v464 = vpack.c.b16 %v342, %v341
    %v465 = vpack.c.b16 %v344, %v343
    %v466 = vpack.c.b16 %v346, %v345
    %v467 = vpack.c.b16 %v348, %v347
    %v468 = vpack.c.b16 %v350, %v349
    %v469 = vpack.c.b16 %v352, %v351
    %v470 = vpack.c.b16 %v354, %v353
    %v471 = vpack.c.b16 %v356, %v355
    %v472 = vpack.c.b16 %v358, %v357
    %v473 = vpack.c.b16 %v360, %v359
    %v474 = vpack.c.b16 %v362, %v361
    %v475 = vpack.c.b16 %v364, %v363
    %v476 = vpack.c.b16 %v366, %v365
    %v477 = vpack.c.b16 %v368, %v367
    %v478 = vpack.c.b16 %v370, %v369
    %v479 = vpack.c.b16 %v372, %v371
    %v480 = vpack.c.b16 %v374, %v373
    %v481 = vpack.c.b16 %v376, %v375
    %v482 = vpack.c.b16 %v378, %v377
    %v483 = vpack.c.b16 %v380, %v379
    %v484 = vpack.c.b16 %v382, %v381
    %v485 = vpack.c.b16 %v384, %v383
    %v486 = vpack.c.b16 %v386, %v385
    %v487 = vpack.c.b16 %v388, %v387
    %v488 = vpack.c.b16 %v390, %v389
    %v489 = vpack.c.b16 %v392, %v391
    %v490 = vpack.c.b16 %v394, %v393
    %v491 = vpack.c.b16 %v396, %v395
    %v492 = vpack.c.b16 %v398, %v397
    %v493 = vpack.c.b16 %v400, %v399
    %v494 = vpack.c.b16 %v402, %v401
    %v495 = vpack.c.b16 %v404, %v403
    %v496 = vpack.c.b16 %v406, %v405
    %v497 = vpack.c.b16 %v408, %v407
    %v498 = vpack.c.b16 %v410, %v409
    %v499 = vpack.c.b16 %v412, %v411
    %v500 = vpack.c.b16 %v414, %v413
    %v501 = vpack.c.b16 %v416, %v415
    %v502 = vpack.c.b16 %v418, %v417
    %v503 = vpack.c.b16 %v420, %v419
    %v504 = vpack.c.b16 %v422, %v421
    %v505 = vpack.c.b16 %v424, %v423
    %v506 = vpack.c.b16 %v426, %v425
    %v507 = vpack.c.b16 %v428, %v427
    %v508 = vpack.c.b16 %v430, %v429
    %v509 = vpack.c.b16 %v432, %v431
    %v510 = vpack.c.b16 %v434, %v433
    %v511 = vpack.c.b16 %v436, %v435
    %v512 = vpack.c.b16 %v438, %v437
    %v513 = vpack.c.b16 %v440, %v439
    %v514 = vpack.c.b16 %v442, %v441
    %v515 = vpack.c.b16 %v444, %v443
    %v516 = vpack.c.b16 %v446, %v445
    %v517 = vpack.c.b16 %v448, %v447
    %v518 = vpack.c.b16 %v450, %v449
    %v519 = vpack.c.b16 %v452, %v451
    %v520 = vpack.c.b16 %v454, %v453
    %v521 = vpack.c.b16 %v456, %v455
    %v522 = vpack.c.b16 %v458, %v457
    %587 = vmatpush.bf16.msra.mxu0 %v466
    %588 = vmatpush.bf16.msra.mxu0 %v465
    %589 = vmatpush.bf16.msra.mxu0 %v464
    %590 = vmatpush.bf16.msra.mxu0 %v463
    %591 = vmatpush.bf16.msra.mxu0 %v462
    %592 = vmatpush.bf16.msra.mxu0 %v461
    %593 = vmatpush.bf16.msra.mxu0 %v460
    %594 = vmatpush.bf16.msra.mxu0 %v459
    %595 = vmatmul.bf16.gmra.mxu0 %v63
    %v596 = vpop.f32.mrf.mxu0
    %v597 = vadd.f32 %v201, %v596
    %v598 = vpop.f32.mrf.mxu0
    %599 = vdwg.mxu0
    %600 = vmatpush.bf16.msra.mxu0 %v474
    %601 = vmatpush.bf16.msra.mxu0 %v473
    %602 = vmatpush.bf16.msra.mxu0 %v472
    %603 = vmatpush.bf16.msra.mxu0 %v471
    %604 = vmatpush.bf16.msra.mxu0 %v470
    %605 = vmatpush.bf16.msra.mxu0 %v469
    %606 = vmatpush.bf16.msra.mxu0 %v468
    %607 = vmatpush.bf16.msra.mxu0 %v467
    %608 = vmatmul.bf16.gmra.mxu0 %v64
    %v609 = vpop.f32.mrf.mxu0
    %v610 = vadd.f32 %v597, %v609
    %v611 = vpop.f32.mrf.mxu0
    %612 = vdwg.mxu0
    %613 = vmatpush.bf16.msra.mxu0 %v482
    %614 = vmatpush.bf16.msra.mxu0 %v481
    %615 = vmatpush.bf16.msra.mxu0 %v480
    %616 = vmatpush.bf16.msra.mxu0 %v479
    %617 = vmatpush.bf16.msra.mxu0 %v478
    %618 = vmatpush.bf16.msra.mxu0 %v477
    %619 = vmatpush.bf16.msra.mxu0 %v476
    %620 = vmatpush.bf16.msra.mxu0 %v475
    %621 = vmatmul.bf16.gmra.mxu0 %v65
    %v622 = vpop.f32.mrf.mxu0
    %v623 = vadd.f32 %v610, %v622
    %v624 = vpop.f32.mrf.mxu0
    %625 = vdwg.mxu0
    %626 = vmatpush.bf16.msra.mxu0 %v490
    %627 = vmatpush.bf16.msra.mxu0 %v489
    %628 = vmatpush.bf16.msra.mxu0 %v488
    %629 = vmatpush.bf16.msra.mxu0 %v487
    %630 = vmatpush.bf16.msra.mxu0 %v486
    %631 = vmatpush.bf16.msra.mxu0 %v485
    %632 = vmatpush.bf16.msra.mxu0 %v484
    %633 = vmatpush.bf16.msra.mxu0 %v483
    %634 = vmatmul.bf16.gmra.mxu0 %v66
    %v635 = vpop.f32.mrf.mxu0
    %v636 = vadd.f32 %v623, %v635
    %v637 = vpop.f32.mrf.mxu0
    %638 = vdwg.mxu0
    %639 = vmatpush.bf16.msra.mxu0 %v498
    %640 = vmatpush.bf16.msra.mxu0 %v497
    %641 = vmatpush.bf16.msra.mxu0 %v496
    %642 = vmatpush.bf16.msra.mxu0 %v495
    %643 = vmatpush.bf16.msra.mxu0 %v494
    %644 = vmatpush.bf16.msra.mxu0 %v493
    %645 = vmatpush.bf16.msra.mxu0 %v492
    %646 = vmatpush.bf16.msra.mxu0 %v491
    %647 = vmatmul.bf16.gmra.mxu0 %v67
    %v648 = vpop.f32.mrf.mxu0
    %v649 = vadd.f32 %v636, %v648
    %v650 = vpop.f32.mrf.mxu0
    %651 = vdwg.mxu0
    %652 = vmatpush.bf16.msra.mxu0 %v506
    %653 = vmatpush.bf16.msra.mxu0 %v505
    %654 = vmatpush.bf16.msra.mxu0 %v504
    %655 = vmatpush.bf16.msra.mxu0 %v503
    %656 = vmatpush.bf16.msra.mxu0 %v502
    %657 = vmatpush.bf16.msra.mxu0 %v501
    %658 = vmatpush.bf16.msra.mxu0 %v500
    %659 = vmatpush.bf16.msra.mxu0 %v499
    %660 = vmatmul.bf16.gmra.mxu0 %v68
    %v661 = vpop.f32.mrf.mxu0
    %v662 = vadd.f32 %v649, %v661
    %v663 = vpop.f32.mrf.mxu0
    %664 = vdwg.mxu0
    %665 = vmatpush.bf16.msra.mxu0 %v514
    %666 = vmatpush.bf16.msra.mxu0 %v513
    %667 = vmatpush.bf16.msra.mxu0 %v512
    %668 = vmatpush.bf16.msra.mxu0 %v511
    %669 = vmatpush.bf16.msra.mxu0 %v510
    %670 = vmatpush.bf16.msra.mxu0 %v509
    %671 = vmatpush.bf16.msra.mxu0 %v508
    %672 = vmatpush.bf16.msra.mxu0 %v507
    %673 = vmatmul.bf16.gmra.mxu0 %v69
    %v674 = vpop.f32.mrf.mxu0
    %v675 = vadd.f32 %v662, %v674
    %v676 = vpop.f32.mrf.mxu0
    %677 = vdwg.mxu0
    %678 = vmatpush.bf16.msra.mxu0 %v522
    %679 = vmatpush.bf16.msra.mxu0 %v521
    %680 = vmatpush.bf16.msra.mxu0 %v520
    %681 = vmatpush.bf16.msra.mxu0 %v519
    %682 = vmatpush.bf16.msra.mxu0 %v518
    %683 = vmatpush.bf16.msra.mxu0 %v517
    %684 = vmatpush.bf16.msra.mxu0 %v516
    %685 = vmatpush.bf16.msra.mxu0 %v515
    %686 = vmatmul.bf16.gmra.mxu0 %v70
    %v687 = vpop.f32.mrf.mxu0
    %v688 = vadd.f32 %v675, %v687
    %v689 = vpop.f32.mrf.mxu0
    %690 = vdwg.mxu0
    %v691 = vmax.f32 %v688, 0.0
    %v692 = vpack.c.bf16 %v691, %v691
    %v693 = vld [vmem:[%s4] sm:$0xf]
    %v694 = vld [vmem:[%s4 + $0x4] sm:$0xf]
    %v695 = vld [vmem:[%s4 + $0x8] sm:$0xf]
    %v696 = vld [vmem:[%s4 + $0xc] sm:$0xf]
    %v697 = vld [vmem:[%s4 + $0x10] sm:$0xf]
    %v698 = vld [vmem:[%s4 + $0x14] sm:$0xf]
    %v699 = vld [vmem:[%s4 + $0x18] sm:$0xf]
    %v700 = vld [vmem:[%s4 + $0x1c] sm:$0xf]
    %v701 = vld [vmem:[%s4 + $0x20] sm:$0xf]
    %v702 = vld [vmem:[%s4 + $0x24] sm:$0xf]
    %v703 = vld [vmem:[%s4 + $0x28] sm:$0xf]
    %v704 = vld [vmem:[%s4 + $0x2c] sm:$0xf]
    %v705 = vld [vmem:[%s4 + $0x30] sm:$0xf]
    %v706 = vld [vmem:[%s4 + $0x34] sm:$0xf]
    %v707 = vld [vmem:[%s4 + $0x38] sm:$0xf]
    %v708 = vld [vmem:[%s4 + $0x3c] sm:$0xf]
    %v709 = vld [vmem:[%s5] sm:$0x1]
    %v711 = vperm.slane %v709, 0
    %v729 = vunpack.c.l.b16 %v693
    %v730 = vunpack.c.l.b16 %v694
    %v731 = vunpack.c.l.b16 %v695
    %v732 = vunpack.c.l.b16 %v696
    %v733 = vunpack.c.l.b16 %v697
    %v734 = vunpack.c.l.b16 %v698
    %v735 = vunpack.c.l.b16 %v699
    %v736 = vunpack.c.l.b16 %v700
    %v737 = vunpack.c.l.b16 %v701
    %v738 = vunpack.c.l.b16 %v702
    %v739 = vunpack.c.l.b16 %v703
    %v740 = vunpack.c.l.b16 %v704
    %v741 = vunpack.c.l.b16 %v705
    %v742 = vunpack.c.l.b16 %v706
    %v743 = vunpack.c.l.b16 %v707
    %v744 = vunpack.c.l.b16 %v708
    %v745 = vpack.c.b16 %v730, %v729
    %v746 = vpack.c.b16 %v732, %v731
    %v747 = vpack.c.b16 %v734, %v733
    %v748 = vpack.c.b16 %v736, %v735
    %v749 = vpack.c.b16 %v738, %v737
    %v750 = vpack.c.b16 %v740, %v739
    %v751 = vpack.c.b16 %v742, %v741
    %v752 = vpack.c.b16 %v744, %v743
    %761 = vmatpush.bf16.msra.mxu0 %v752
    %762 = vmatpush.bf16.msra.mxu0 %v751
    %763 = vmatpush.bf16.msra.mxu0 %v750
    %764 = vmatpush.bf16.msra.mxu0 %v749
    %765 = vmatpush.bf16.msra.mxu0 %v748
    %766 = vmatpush.bf16.msra.mxu0 %v747
    %767 = vmatpush.bf16.msra.mxu0 %v746
    %768 = vmatpush.bf16.msra.mxu0 %v745
    %769 = vmatmul.bf16.gmra.mxu0 %v692
    %v770 = vpop.f32.mrf.mxu0
    %v771 = vadd.f32 %v711, %v770
    %v772 = vpop.f32.mrf.mxu0
    %773 = vdwg.mxu0
    %v774 = vld [vmem:[%s1] sm:$0xff]
    %v775 = vld [vmem:[%s1 + $0x8] sm:$0xff]
    %778 = vst [vmem:[#allocation1] ss:$4 sm:$0xff] %v774
    %s779 = scalar_lea.vmem [#allocation1], 32
    %780 = vst [vmem:[%s779] ss:$4 sm:$0xff] %v775
    %v781 = vld.sshfl [vmem:[#allocation1] sm:$0xff pattern:$0x73625140]
    %v782 = vld.sshfl [vmem:[#allocation1 + $0x8] sm:$0xff pattern:$0x73625140]
    %v783 = vld.sshfl [vmem:[#allocation1 + $0x10] sm:$0xff pattern:$0x73625140]
    %v784 = vld.sshfl [vmem:[#allocation1 + $0x18] sm:$0xff pattern:$0x73625140]
    %v785 = vld.sshfl [vmem:[#allocation1 + $0x20] sm:$0xff pattern:$0x73625140]
    %v786 = vld.sshfl [vmem:[#allocation1 + $0x28] sm:$0xff pattern:$0x73625140]
    %v787 = vld.sshfl [vmem:[#allocation1 + $0x30] sm:$0xff pattern:$0x73625140]
    %v788 = vld.sshfl [vmem:[#allocation1 + $0x38] sm:$0xff pattern:$0x73625140]
    %v797 = vpack.c.bf16 %v781, %v781
    %v798 = vpack.c.bf16 %v782, %v782
    %v799 = vpack.c.bf16 %v783, %v783
    %v800 = vpack.c.bf16 %v784, %v784
    %v801 = vpack.c.bf16 %v785, %v785
    %v802 = vpack.c.bf16 %v786, %v786
    %v803 = vpack.c.bf16 %v787, %v787
    %v804 = vpack.c.bf16 %v788, %v788
    %805 = vmatpush.bf16.msra.mxu0 %v466
    %806 = vmatpush.bf16.msra.mxu0 %v465
    %807 = vmatpush.bf16.msra.mxu0 %v464
    %808 = vmatpush.bf16.msra.mxu0 %v463
    %809 = vmatpush.bf16.msra.mxu0 %v462
    %810 = vmatpush.bf16.msra.mxu0 %v461
    %811 = vmatpush.bf16.msra.mxu0 %v460
    %812 = vmatpush.bf16.msra.mxu0 %v459
    %813 = vmatmul.bf16.gmra.mxu0 %v797
    %v814 = vpop.f32.mrf.mxu0
    %v815 = vadd.f32 %v201, %v814
    %v816 = vpop.f32.mrf.mxu0
    %817 = vdwg.mxu0
    %818 = vmatpush.bf16.msra.mxu0 %v474
    %819 = vmatpush.bf16.msra.mxu0 %v473
    %820 = vmatpush.bf16.msra.mxu0 %v472
    %821 = vmatpush.bf16.msra.mxu0 %v471
    %822 = vmatpush.bf16.msra.mxu0 %v470
    %823 = vmatpush.bf16.msra.mxu0 %v469
    %824 = vmatpush.bf16.msra.mxu0 %v468
    %825 = vmatpush.bf16.msra.mxu0 %v467
    %826 = vmatmul.bf16.gmra.mxu0 %v798
    %v827 = vpop.f32.mrf.mxu0
    %v828 = vadd.f32 %v815, %v827
    %v829 = vpop.f32.mrf.mxu0
    %830 = vdwg.mxu0
    %831 = vmatpush.bf16.msra.mxu0 %v482
    %832 = vmatpush.bf16.msra.mxu0 %v481
    %833 = vmatpush.bf16.msra.mxu0 %v480
    %834 = vmatpush.bf16.msra.mxu0 %v479
    %835 = vmatpush.bf16.msra.mxu0 %v478
    %836 = vmatpush.bf16.msra.mxu0 %v477
    %837 = vmatpush.bf16.msra.mxu0 %v476
    %838 = vmatpush.bf16.msra.mxu0 %v475
    %839 = vmatmul.bf16.gmra.mxu0 %v799
    %v840 = vpop.f32.mrf.mxu0
    %v841 = vadd.f32 %v828, %v840
    %v842 = vpop.f32.mrf.mxu0
    %843 = vdwg.mxu0
    %844 = vmatpush.bf16.msra.mxu0 %v490
    %845 = vmatpush.bf16.msra.mxu0 %v489
    %846 = vmatpush.bf16.msra.mxu0 %v488
    %847 = vmatpush.bf16.msra.mxu0 %v487
    %848 = vmatpush.bf16.msra.mxu0 %v486
    %849 = vmatpush.bf16.msra.mxu0 %v485
    %850 = vmatpush.bf16.msra.mxu0 %v484
    %851 = vmatpush.bf16.msra.mxu0 %v483
    %852 = vmatmul.bf16.gmra.mxu0 %v800
    %v853 = vpop.f32.mrf.mxu0
    %v854 = vadd.f32 %v841, %v853
    %v855 = vpop.f32.mrf.mxu0
    %856 = vdwg.mxu0
    %857 = vmatpush.bf16.msra.mxu0 %v498
    %858 = vmatpush.bf16.msra.mxu0 %v497
    %859 = vmatpush.bf16.msra.mxu0 %v496
    %860 = vmatpush.bf16.msra.mxu0 %v495
    %861 = vmatpush.bf16.msra.mxu0 %v494
    %862 = vmatpush.bf16.msra.mxu0 %v493
    %863 = vmatpush.bf16.msra.mxu0 %v492
    %864 = vmatpush.bf16.msra.mxu0 %v491
    %865 = vmatmul.bf16.gmra.mxu0 %v801
    %v866 = vpop.f32.mrf.mxu0
    %v867 = vadd.f32 %v854, %v866
    %v868 = vpop.f32.mrf.mxu0
    %869 = vdwg.mxu0
    %870 = vmatpush.bf16.msra.mxu0 %v506
    %871 = vmatpush.bf16.msra.mxu0 %v505
    %872 = vmatpush.bf16.msra.mxu0 %v504
    %873 = vmatpush.bf16.msra.mxu0 %v503
    %874 = vmatpush.bf16.msra.mxu0 %v502
    %875 = vmatpush.bf16.msra.mxu0 %v501
    %876 = vmatpush.bf16.msra.mxu0 %v500
    %877 = vmatpush.bf16.msra.mxu0 %v499
    %878 = vmatmul.bf16.gmra.mxu0 %v802
    %v879 = vpop.f32.mrf.mxu0
    %v880 = vadd.f32 %v867, %v879
    %v881 = vpop.f32.mrf.mxu0
    %882 = vdwg.mxu0
    %883 = vmatpush.bf16.msra.mxu0 %v514
    %884 = vmatpush.bf16.msra.mxu0 %v513
    %885 = vmatpush.bf16.msra.mxu0 %v512
    %886 = vmatpush.bf16.msra.mxu0 %v511
    %887 = vmatpush.bf16.msra.mxu0 %v510
    %888 = vmatpush.bf16.msra.mxu0 %v509
    %889 = vmatpush.bf16.msra.mxu0 %v508
    %890 = vmatpush.bf16.msra.mxu0 %v507
    %891 = vmatmul.bf16.gmra.mxu0 %v803
    %v892 = vpop.f32.mrf.mxu0
    %v893 = vadd.f32 %v880, %v892
    %v894 = vpop.f32.mrf.mxu0
    %895 = vdwg.mxu0
    %896 = vmatpush.bf16.msra.mxu0 %v522
    %897 = vmatpush.bf16.msra.mxu0 %v521
    %898 = vmatpush.bf16.msra.mxu0 %v520
    %899 = vmatpush.bf16.msra.mxu0 %v519
    %900 = vmatpush.bf16.msra.mxu0 %v518
    %901 = vmatpush.bf16.msra.mxu0 %v517
    %902 = vmatpush.bf16.msra.mxu0 %v516
    %903 = vmatpush.bf16.msra.mxu0 %v515
    %904 = vmatmul.bf16.gmra.mxu0 %v804
    %v905 = vpop.f32.mrf.mxu0
    %v906 = vadd.f32 %v893, %v905
    %v907 = vpop.f32.mrf.mxu0
    %908 = vdwg.mxu0
    %v909 = vmax.f32 %v906, 0.0
    %v910 = vpack.c.bf16 %v909, %v909
    %911 = vmatpush.bf16.msra.mxu0 %v752
    %912 = vmatpush.bf16.msra.mxu0 %v751
    %913 = vmatpush.bf16.msra.mxu0 %v750
    %914 = vmatpush.bf16.msra.mxu0 %v749
    %915 = vmatpush.bf16.msra.mxu0 %v748
    %916 = vmatpush.bf16.msra.mxu0 %v747
    %917 = vmatpush.bf16.msra.mxu0 %v746
    %918 = vmatpush.bf16.msra.mxu0 %v745
    %919 = vmatmul.bf16.gmra.mxu0 %v910
    %v920 = vpop.f32.mrf.mxu0
    %v921 = vadd.f32 %v711, %v920
    %v922 = vpop.f32.mrf.mxu0
    %923 = vdwg.mxu0
    %v924 = vperm.slane %v921, 0
    %v925 = vsub.f32 %v771, %v924
    %v926 = vmul.f32 %v925, %v925
    %vm927 = vcmask 517120
    %v928 = vsel %vm927, %v926, 0.0
    %929 = vadd.xlane.f32.xlu0 %v928
    %v930 = vpop.xlane.xlu0 %929
    %v931 = vperm.slane %v921, 1
    %v932 = vsub.f32 %v771, %v931
    %v933 = vmul.f32 %v932, %v932
    %v934 = vsel %vm927, %v933, 0.0
    %935 = vadd.xlane.f32.xlu0 %v934
    %v936 = vpop.xlane.xlu0 %935
    %vm937 = vcmask 7168
    %v938 = vsel %vm937, %v930, %v936
    %v939 = vrsqrt.pop %v938
    %v940 = vmul.f32 %v939, %v938
    %v941 = vmul.f32 %v940, %v939
    %v942 = vmul.f32 0.5, %v941
    %v943 = vsub.f32 1.5, %v942
    %v944 = vmul.f32 %v939, %v943
    %v945 = vmul.f32 %v938, %v944
    %vm946 = vcmp.eq.f32.partialorder %v938, inf
    %v947 = vsel %vm946, %v938, %v945
    %vm948 = vcmp.eq.f32.partialorder %v938, 0.0
    %v949 = vand.u32 %v938, 2147483648
    %v950 = vsel %vm948, %v949, %v947
    %vm951 = vcmask 9216
    %952 = vst.msk [vmem:[#allocation5] sm:$0x3] %vm951, %v950
    // Predicated region
    $region30: #{tpu_custom_call.1} parent=1 // pred_check
      _
    $region31: #{tpu_custom_call.1} parent=1 // pred_check_branch
      %954 = sbr.rel (0) target = $region33
    $region32: #{tpu_custom_call.1} parent=1 // pred_region
      %956 = vsyncadd [#allocation4], 0
      %s958 = sshll.u32 [#allocation5], 4
      %s959 = int_to_ptr.vmem [resolvable:$true] %s958
      %s960 = sshll.u32 %s6, 4
      %s961 = int_to_ptr.hbm [resolvable:$true] %s960
      %963 = dma.vmem_to_hbm [thread:$0]  %s959, 32, %s961, [#allocation4]
    $region33: #{tpu_custom_call.1} parent=1 // pred_fallthru
      _
    // Predicated region
    $region34: #{tpu_custom_call.1} parent=1 // pred_check
      _
    $region35: #{tpu_custom_call.1} parent=1 // pred_check_branch
      %965 = sbr.rel (0) target = $region37
    $region36: #{tpu_custom_call.1} parent=1 // pred_region
      %967 = dma.done [#allocation4], 32
    $region37: #{tpu_custom_call.1} parent=1 // pred_fallthru
      _
    %968 = vsyncpa [#allocation3], 1
    %969 = vsyncpa [#allocation4], 1

</llo_original>
